<compile_context>
chip_gen: v5e
topology: v5e:2x2
jax: 0.10.0
libtpu: 0.0.40
codegen_flags: <defaults>
</compile_context>

<pallas_src>
import jax
import jax.numpy as jnp
from jax.experimental import pallas as pl
from jax.experimental.pallas import tpu as pltpu


def _depth_texture_att_kernel(dp_ref, feat_ref, w1_ref, w2_ref, out_ref):
    # dp_ref   : (32, tile_L) bf16  depth_prob, channels on sublanes / spatial on lanes
    # feat_ref : (C,  tile_L)       feature tile, native dtype
    # w1_ref   : (32, 32)     bf16  first 1x1 conv weight, (out, in)
    # w2_ref   : (C,  32)     bf16  second 1x1 conv weight, pre-sliced to the C used rows
    # out_ref  : (C,  tile_L)
    # 1x1 convs over channels == (out,in) @ (in,L); bf16 MXU, f32 accumulation.
    h = jnp.dot(w1_ref[...], dp_ref[...], preferred_element_type=jnp.float32)
    h = jnp.maximum(h, 0.0).astype(jnp.bfloat16)      # ReLU, back to bf16 for the MXU
    h = jnp.dot(w2_ref[...], h, preferred_element_type=jnp.float32)
    h = jnp.maximum(h, 0.0)                           # ReLU (f32), shape (C, tile_L)

    # sigmoid(h) = 1 / (1 + exp(-h)); exp and the approx reciprocal both run on the EUP.
    a = pl.reciprocal(1.0 + jnp.exp(-h), approx=True)

    # Epilogue multiply in feat's native dtype (bf16 feat stays bf16 on v6e/v7x;
    # f32 feat stays f32, e.g. on v5e / in the self-test).
    f = feat_ref[...]
    out_ref[...] = (f * a.astype(f.dtype)).astype(out_ref.dtype)


def depth_texture_att(feat, depth_prob, w1, w2, *, max_tile_l=16384):
    """feat: [B, C, H, W], depth_prob: [B, 32, H, W], w1/w2: [32, 32, 1, 1]."""
    B, C, H, W = feat.shape
    assert depth_prob.shape == (B, 32, H, W)
    # Only the first C of the 32 attention channels gate feat (matches the
    # reference forward); callers must have C <= 32.
    assert C <= 32

    L = H * W

    # Lane-dense tiling without any wrapper-side padding: pick tile_l = 128*d
    # where d is the largest divisor of ceil(L/128) with 128*d <= max_tile_l.
    # Only the final block can be ragged (by < 128 lanes) and Pallas masks it.
    n128 = pl.cdiv(L, 128)
    max_d = max(1, max_tile_l // 128)
    if B == 1 and n128 >= 2:
        # Keep >= 2 parallel grid steps so both v7x TensorCores get work.
        max_d = min(max_d, n128 // 2)
    d = 1
    for cand in range(2, int(max_d) + 1):
        if n128 % cand == 0:
            d = cand
    tile_l = 128 * d
    n_tiles = n128 // d

    # Pure reshapes (no transpose): channels stay on the sublane axis, the
    # flattened spatial axis goes on lanes.  depth_prob + weights -> bf16.
    dp_rows = depth_prob.reshape(B, 32, L).astype(jnp.bfloat16)
    ft_rows = feat.reshape(B, C, L)
    w1_m = w1.reshape(32, 32).astype(jnp.bfloat16)        # (out, in)
    w2_m = w2.reshape(32, 32)[:C].astype(jnp.bfloat16)    # only C output rows are used

    bytes_accessed = (
        dp_rows.size * dp_rows.dtype.itemsize
        + ft_rows.size * ft_rows.dtype.itemsize
        + B * C * L * feat.dtype.itemsize
        + w1_m.size * w1_m.dtype.itemsize
        + w2_m.size * w2_m.dtype.itemsize)
    cost = pl.CostEstimate(
        flops=2 * 32 * (32 + C) * B * L,
        transcendentals=2 * C * B * L,        # exp + reciprocal
        bytes_accessed=bytes_accessed)

    out_rows = pl.pallas_call(
        _depth_texture_att_kernel,
        out_shape=jax.ShapeDtypeStruct((B, C, L), feat.dtype),
        grid_spec=pltpu.PrefetchScalarGridSpec(
            num_scalar_prefetch=0,
            grid=(B, n_tiles),
            in_specs=[
                pl.BlockSpec((None, 32, tile_l), lambda b, s: (b, 0, s)),
                pl.BlockSpec((None, C, tile_l), lambda b, s: (b, 0, s)),
                pl.BlockSpec((32, 32), lambda b, s: (0, 0)),
                pl.BlockSpec((C, 32), lambda b, s: (0, 0)),
            ],
            out_specs=pl.BlockSpec((None, C, tile_l), lambda b, s: (b, 0, s)),
        ),
        compiler_params=pltpu.CompilerParams(
            dimension_semantics=("parallel", "parallel"),
            vmem_limit_bytes=32 * 1024 * 1024),
        cost_estimate=cost,
    )(dp_rows, ft_rows, w1_m, w2_m)

    return out_rows.reshape(B, C, H, W)


def _reference(feat, depth_prob, w1, w2):
    """Pure-JAX f32 reference mirroring the PyTorch forward."""
    B, C, H, W = feat.shape
    x = depth_prob.reshape(B, 32, H * W)
    h = jnp.maximum(jnp.einsum("oc,bcl->bol", w1.reshape(32, 32), x), 0.0)
    h = jnp.maximum(jnp.einsum("oc,bcl->bol", w2.reshape(32, 32), h), 0.0)
    a = jax.nn.sigmoid(h[:, :C]).reshape(B, C, H, W)
    return feat * a


if __name__ == "__main__":
    key = jax.random.PRNGKey(0)
    k_feat, k_dp, k_w1, k_w2 = jax.random.split(key, 4)

    B, C, H, W = 2, 4, 16, 16          # feat channels C = 4
    feat = jax.random.normal(k_feat, (B, C, H, W), dtype=jnp.float32)
    depth_prob = jax.nn.softmax(
        jax.random.normal(k_dp, (B, 32, H, W), dtype=jnp.float32), axis=1)

    # Deterministic synthetic Conv2d(32, 32, 1, 1, bias=False) weights.
    w1 = jax.random.normal(k_w1, (32, 32, 1, 1), dtype=jnp.float32) * 0.1
    w2 = jax.random.normal(k_w2, (32, 32, 1, 1), dtype=jnp.float32) * 0.1

    out = depth_texture_att(feat, depth_prob, w1, w2)
    out = jax.block_until_ready(out)

    ref = _reference(feat, depth_prob, w1, w2)
    assert out.shape == (B, C, H, W)
    # bf16 MXU path + approx reciprocal: loosened tolerance vs the f32 reference.
    assert jnp.allclose(out, ref, atol=1e-2, rtol=1e-2), "mismatch vs reference"

    print("KERNEL_OK")
</pallas_src>

<mosaic_0001>
module attributes {stable_mosaic.version = 11 : i64} {
  func.func @_depth_texture_att_kernel(%arg0: i32, %arg1: i32, %arg2: memref<1x32x256xbf16, #tpu.memory_space<vmem>>, %arg3: memref<1x4x256xf32, #tpu.memory_space<vmem>>, %arg4: memref<32x32xbf16, #tpu.memory_space<vmem>>, %arg5: memref<4x32xbf16, #tpu.memory_space<vmem>>, %arg6: memref<1x4x256xf32, #tpu.memory_space<vmem>>) attributes {dimension_semantics = [#tpu.dimension_semantics<parallel>, #tpu.dimension_semantics<parallel>], iteration_bounds = array<i64: 2, 1>, scalar_prefetch = 0 : i64, scratch_operands = 0 : i64, tpu.core_type = #tpu.core_type<tc>, window_params = [{transform_indices = @transform_0, window_bounds = array<i64: 1, 32, 256>}, {transform_indices = @transform_1, window_bounds = array<i64: 1, 4, 256>}, {pipeline_mode = #tpu.pipeline_mode<synchronous>, transform_indices = @transform_2, window_bounds = array<i64: 32, 32>}, {pipeline_mode = #tpu.pipeline_mode<synchronous>, transform_indices = @transform_3, window_bounds = array<i64: 4, 32>}, {transform_indices = @transform_4, window_bounds = array<i64: 1, 4, 256>}]} {
    %c0 = arith.constant 0 : index
    %c0_0 = arith.constant 0 : index
    %0 = vector.load %arg4[%c0, %c0_0] : memref<32x32xbf16, #tpu.memory_space<vmem>>, vector<32x32xbf16>
    %c0_1 = arith.constant 0 : index
    %c0_2 = arith.constant 0 : index
    %c0_3 = arith.constant 0 : index
    %1 = vector.load %arg2[%c0_1, %c0_2, %c0_3] : memref<1x32x256xbf16, #tpu.memory_space<vmem>>, vector<1x32x256xbf16>
    %2 = vector.shape_cast %1 : vector<1x32x256xbf16> to vector<32x256xbf16>
    %cst = arith.constant dense<0.000000e+00> : vector<32x256xf32>
    %3 = tpu.matmul %0, %2, %cst {dimension_numbers = #tpu.dot_dimension_numbers<[1], [0], [0], [1], [0, 0, 1, 1], [], []>} : vector<32x32xbf16>, vector<32x256xbf16>, vector<32x256xf32> -> vector<32x256xf32>
    %cst_4 = arith.constant 0.000000e+00 : f32
    %4 = vector.broadcast %cst_4 : f32 to vector<32x256xf32>
    %5 = arith.maximumf %3, %4 : vector<32x256xf32>
    %6 = arith.truncf %5 : vector<32x256xf32> to vector<32x256xbf16>
    %c0_5 = arith.constant 0 : index
    %c0_6 = arith.constant 0 : index
    %7 = vector.load %arg5[%c0_5, %c0_6] : memref<4x32xbf16, #tpu.memory_space<vmem>>, vector<4x32xbf16>
    %cst_7 = arith.constant dense<0.000000e+00> : vector<4x256xf32>
    %8 = tpu.matmul %7, %6, %cst_7 {dimension_numbers = #tpu.dot_dimension_numbers<[1], [0], [0], [1], [0, 0, 1, 1], [], []>} : vector<4x32xbf16>, vector<32x256xbf16>, vector<4x256xf32> -> vector<4x256xf32>
    %cst_8 = arith.constant 0.000000e+00 : f32
    %9 = vector.broadcast %cst_8 : f32 to vector<4x256xf32>
    %10 = arith.maximumf %8, %9 : vector<4x256xf32>
    %cst_9 = arith.constant 0.000000e+00 : f32
    %11 = vector.broadcast %cst_9 : f32 to vector<4x256xf32>
    %12 = arith.subf %11, %10 : vector<4x256xf32>
    %13 = math.exp %12 : vector<4x256xf32>
    %cst_10 = arith.constant 1.000000e+00 : f32
    %14 = vector.broadcast %cst_10 : f32 to vector<4x256xf32>
    %15 = arith.addf %14, %13 : vector<4x256xf32>
    %16 = tpu.reciprocal %15 {approx = true} : vector<4x256xf32> -> vector<4x256xf32>
    %c0_11 = arith.constant 0 : index
    %c0_12 = arith.constant 0 : index
    %c0_13 = arith.constant 0 : index
    %17 = vector.load %arg3[%c0_11, %c0_12, %c0_13] : memref<1x4x256xf32, #tpu.memory_space<vmem>>, vector<1x4x256xf32>
    %18 = vector.shape_cast %17 : vector<1x4x256xf32> to vector<4x256xf32>
    %19 = arith.mulf %18, %16 : vector<4x256xf32>
    %c0_14 = arith.constant 0 : index
    %c0_15 = arith.constant 0 : index
    %c0_16 = arith.constant 0 : index
    %20 = vector.load %arg6[%c0_14, %c0_15, %c0_16] : memref<1x4x256xf32, #tpu.memory_space<vmem>>, vector<1x4x256xf32>
    %21 = vector.shape_cast %20 : vector<1x4x256xf32> to vector<4x256xf32>
    %22 = vector.shape_cast %19 : vector<4x256xf32> to vector<1x4x256xf32>
    tpu.vector_store %arg6[%c0_14, %c0_15, %c0_16], %22 {strides = array<i32>} : memref<1x4x256xf32, #tpu.memory_space<vmem>>, vector<1x4x256xf32>,
    return
  }
  func.func @transform_0(%arg0: i32, %arg1: i32) -> (i32, i32, i32) {
    %c0_i32 = arith.constant 0 : i32
    %c0_i32_0 = arith.constant 0 : i32
    return %arg0, %c0_i32, %arg1 : i32, i32, i32
  }
  func.func @transform_1(%arg0: i32, %arg1: i32) -> (i32, i32, i32) {
    %c0_i32 = arith.constant 0 : i32
    %c0_i32_0 = arith.constant 0 : i32
    return %arg0, %c0_i32, %arg1 : i32, i32, i32
  }
  func.func @transform_2(%arg0: i32, %arg1: i32) -> (i32, i32) {
    %c0_i32 = arith.constant 0 : i32
    %c0_i32_0 = arith.constant 0 : i32
    %c0_i32_1 = arith.constant 0 : i32
    return %c0_i32, %c0_i32_0 : i32, i32
  }
  func.func @transform_3(%arg0: i32, %arg1: i32) -> (i32, i32) {
    %c0_i32 = arith.constant 0 : i32
    %c0_i32_0 = arith.constant 0 : i32
    %c0_i32_1 = arith.constant 0 : i32
    return %c0_i32, %c0_i32_0 : i32, i32
  }
  func.func @transform_4(%arg0: i32, %arg1: i32) -> (i32, i32, i32) {
    %c0_i32 = arith.constant 0 : i32
    %c0_i32_0 = arith.constant 0 : i32
    return %arg0, %c0_i32, %arg1 : i32, i32, i32
  }
}

</mosaic_0001>

<llo_original>
// kernel: tpu_custom_call.1
$region0: #{tpu_custom_call.1}
  #allocation0 [shape = 'u32[]', space=smem, size = 0x4, offset = 0x4, fixed_abs, tag = 'smem constant byte address 0x4 - core index']
  #allocation1 [shape = 'u32[72,128]{1,0:T(1,128)}', space=vmem, size = 0x9000, scoped, tag = 'internal scratch']
  %s0 = inlined_call_operand.hbm [shape: bf16[2,32,256], index: 0, kind: input, shape index: {}]
  %s1 = inlined_call_operand.hbm [shape: f32[2,4,256], index: 1, kind: input, shape index: {}]
  %s2 = inlined_call_operand.hbm [shape: bf16[32,32], index: 2, kind: input, shape index: {}]
  %s3 = inlined_call_operand.vmem [shape: bf16[4,32], index: 3, kind: input, shape index: {}]
  %s4 = inlined_call_operand.hbm [shape: f32[2,4,256], index: 4, kind: output, shape index: {}]
  %s5 = sld [smem:[#allocation0]]
  $region61: #{tpu_custom_call.1} parent=0
    _
  %s7 = ssub.s32 1, %s5
  %s8 = scalar_select 0, %s7, %s5
  $region1: #{tpu_custom_call.1} parent=0
    #allocation2 [shape = 'u8[32768]{0}', space=vmem, size = 0x8000, scoped, tag = 'input window, operand 0']
    #allocation3 [shape = 's32[2]{0}', space=sflag, size = 0x8, scoped, tag = 'scoped memory for tpu_custom_call.1']
    #allocation4 [shape = 's32[2]{0}', space=sflag, size = 0x8, scoped, tag = 'scoped memory for tpu_custom_call.1']
    #allocation5 [shape = 'u8[8192]{0}', space=vmem, size = 0x2000, scoped, tag = 'input window, operand 1']
    #allocation6 [shape = 's32[2]{0}', space=sflag, size = 0x8, scoped, tag = 'scoped memory for tpu_custom_call.1']
    #allocation7 [shape = 'u8[8192]{0}', space=vmem, size = 0x2000, scoped, tag = 'input window, operand 2, single buffered']
    #allocation8 [shape = 'u8[8192]{0}', space=vmem, size = 0x2000, scoped, tag = 'output window, operand 0']
    %9 = vsyncpa [#allocation3], 0
    %s10 = scalar_lea.sflag [#allocation3], 1
    %11 = vsyncpa %s10, 0
    %12 = vsyncpa [#allocation6], 0
    %s13 = scalar_lea.sflag [#allocation6], 1
    %14 = vsyncpa %s13, 0
    %15 = vsyncpa [#allocation4], 0
    %s16 = scalar_lea.sflag [#allocation4], 1
    %17 = vsyncpa %s16, 0
    loop: start=0, step=1, limit=4
    $region2: #{tpu_custom_call.1} parent=1 // loop_pre_header
      _
    $region3: #{tpu_custom_call.1} parent=1 // loop_header
      %s19 = sphi 0, %s23
      %p20 = scmp.ge.s32.totalorder %s19, 4
      %s26 = sphi 0, %s38
      %s27 = sphi 0, %s34
      %s28 = sphi 0, %s26
      %s29 = sphi 0, %s27
      %s30 = sphi 0, %s28
      %s31 = sphi 0, %s29
      %s43 = sphi 0, %s45
      %s46 = sphi 0, %s43
      %s47 = sphi 0, %s46
      %s63 = sphi 0, %s47
      %s71 = sphi 0, %s73
      %s74 = sphi 0, %s71
      %s75 = sphi 0, %s74
      %s91 = sphi 0, %s75
      %s95 = sphi 0, %s95
      %s97 = sphi 0, %s95
      %s98 = sphi 0, %s97
      %s112 = sphi 0, %s98
      %s116 = sphi 0, %s116
      %s118 = sphi 0, %s116
      %s119 = sphi 0, %s118
      %s133 = sphi 0, %s119
      %s141 = sphi 0, %s143
      %s144 = sphi 0, %s141
      %s145 = sphi 0, %s144
      %s161 = sphi 0, %s145
    $region4: #{tpu_custom_call.1} parent=1 // loop_header_branch
      %22 = sbr.rel (%p20) target = $region8
    $region5: #{tpu_custom_call.1} parent=1 // loop_body
      %s24 = ssub.s32 %s19, 1
      %s25 = ssub.s32 %s19, 2
      %s32 = sadd.s32 1, %s27
      %p33 = scmp.ge.s32.totalorder %s32, 1
      %s34 = scalar_select %p33, 0, %s32
      %s35 = sadd.s32 1, %s26
      %s36 = scalar_select %p33, %s35, %s26
      %p37 = scmp.ge.s32.totalorder %s36, 2
      %s38 = scalar_select %p37, 0, %s36
      %s39 = ssub.s32 %s26, %s38
      %s40 = ssub.s32 %s27, %s34
      %s41 = sor.u32 %s39, %s40
      %p42 = scmp.eq.s32.totalorder %s41, 0
      %s44 = sadd.s32 %s43, 1
      %s45 = scalar_select %p42, %s43, %s44
      %p48 = pneg %p42
      %p49 = scmp.eq.s32.totalorder %s19, 1
      %p50 = por %p48, %p49
      %p51 = scmp.ne.s32.totalorder %s43, %s46
      %p52 = scmp.eq.s32.totalorder %s19, 0
      %p53 = por %p51, %p52
      %p54 = scmp.ne.s32.totalorder %s43, %s46
      %p55 = scmp.eq.s32.totalorder %s24, 1
      %p56 = por %p54, %p55
      %p57 = scmp.ne.s32.totalorder %s46, %s47
      %p58 = scmp.eq.s32.totalorder %s24, 0
      %p59 = por %p57, %p58
      %p60 = scmp.ne.s32.totalorder %s46, %s47
      %p61 = scmp.eq.s32.totalorder %s25, 1
      %p62 = por %p60, %p61
      %p64 = scmp.ne.s32.totalorder %s47, %s63
      %p65 = scmp.eq.s32.totalorder %s25, 0
      %p66 = por %p64, %p65
      %s67 = ssub.s32 %s26, %s38
      %s68 = ssub.s32 %s27, %s34
      %s69 = sor.u32 %s67, %s68
      %p70 = scmp.eq.s32.totalorder %s69, 0
      %s72 = sadd.s32 %s71, 1
      %s73 = scalar_select %p70, %s71, %s72
      %p76 = pneg %p70
      %p77 = scmp.eq.s32.totalorder %s19, 1
      %p78 = por %p76, %p77
      %p79 = scmp.ne.s32.totalorder %s71, %s74
      %p80 = scmp.eq.s32.totalorder %s19, 0
      %p81 = por %p79, %p80
      %p82 = scmp.ne.s32.totalorder %s71, %s74
      %p83 = scmp.eq.s32.totalorder %s24, 1
      %p84 = por %p82, %p83
      %p85 = scmp.ne.s32.totalorder %s74, %s75
      %p86 = scmp.eq.s32.totalorder %s24, 0
      %p87 = por %p85, %p86
      %p88 = scmp.ne.s32.totalorder %s74, %s75
      %p89 = scmp.eq.s32.totalorder %s25, 1
      %p90 = por %p88, %p89
      %p92 = scmp.ne.s32.totalorder %s75, %s91
      %p93 = scmp.eq.s32.totalorder %s25, 0
      %p94 = por %p92, %p93
      %s96 = sadd.s32 %s95, 1
      %p99 = scmp.eq.s32.totalorder %s19, 1
      %p100 = scmp.ne.s32.totalorder %s95, %s97
      %p101 = scmp.eq.s32.totalorder %s19, 0
      %p102 = por %p100, %p101
      %p103 = scmp.ne.s32.totalorder %s95, %s97
      %p104 = scmp.eq.s32.totalorder %s24, 1
      %p105 = por %p103, %p104
      %p106 = scmp.ne.s32.totalorder %s97, %s98
      %p107 = scmp.eq.s32.totalorder %s24, 0
      %p108 = por %p106, %p107
      %p109 = scmp.ne.s32.totalorder %s97, %s98
      %p110 = scmp.eq.s32.totalorder %s25, 1
      %p111 = por %p109, %p110
      %p113 = scmp.ne.s32.totalorder %s98, %s112
      %p114 = scmp.eq.s32.totalorder %s25, 0
      %p115 = por %p113, %p114
      %s117 = sadd.s32 %s116, 1
      %p120 = scmp.eq.s32.totalorder %s19, 1
      %p121 = scmp.ne.s32.totalorder %s116, %s118
      %p122 = scmp.eq.s32.totalorder %s19, 0
      %p123 = por %p121, %p122
      %p124 = scmp.ne.s32.totalorder %s116, %s118
      %p125 = scmp.eq.s32.totalorder %s24, 1
      %p126 = por %p124, %p125
      %p127 = scmp.ne.s32.totalorder %s118, %s119
      %p128 = scmp.eq.s32.totalorder %s24, 0
      %p129 = por %p127, %p128
      %p130 = scmp.ne.s32.totalorder %s118, %s119
      %p131 = scmp.eq.s32.totalorder %s25, 1
      %p132 = por %p130, %p131
      %p134 = scmp.ne.s32.totalorder %s119, %s133
      %p135 = scmp.eq.s32.totalorder %s25, 0
      %p136 = por %p134, %p135
      %s137 = ssub.s32 %s26, %s38
      %s138 = ssub.s32 %s27, %s34
      %s139 = sor.u32 %s137, %s138
      %p140 = scmp.eq.s32.totalorder %s139, 0
      %s142 = sadd.s32 %s141, 1
      %s143 = scalar_select %p140, %s141, %s142
      %p146 = pneg %p140
      %p147 = scmp.eq.s32.totalorder %s19, 1
      %p148 = por %p146, %p147
      %p149 = scmp.ne.s32.totalorder %s141, %s144
      %p150 = scmp.eq.s32.totalorder %s19, 0
      %p151 = por %p149, %p150
      %p152 = scmp.ne.s32.totalorder %s141, %s144
      %p153 = scmp.eq.s32.totalorder %s24, 1
      %p154 = por %p152, %p153
      %p155 = scmp.ne.s32.totalorder %s144, %s145
      %p156 = scmp.eq.s32.totalorder %s24, 0
      %p157 = por %p155, %p156
      %p158 = scmp.ne.s32.totalorder %s144, %s145
      %p159 = scmp.eq.s32.totalorder %s25, 1
      %p160 = por %p158, %p159
      %p162 = scmp.ne.s32.totalorder %s145, %s161
      %p163 = scmp.eq.s32.totalorder %s25, 0
      %p164 = por %p162, %p163
      %p165 = scmp.le.s32.totalorder 1, %s19
      %p166 = scmp.lt.s32.totalorder %s19, 3
      %p167 = pnand %p165, %p166
      %p168 = pneg %p167
      // Predicated region
      $region9: #{tpu_custom_call.1} parent=5 // pred_check
        _
      $region10: #{tpu_custom_call.1} parent=5 // pred_check_branch
        %170 = sbr.rel (%p167) target = $region12
      $region11: #{tpu_custom_call.1} parent=5 // pred_region
        %s171 = ssub.s32 %s19, 1
        // Predicated region
        $region13: #{tpu_custom_call.1} parent=11 // pred_check
          %p172 = pneg %p108
        $region14: #{tpu_custom_call.1} parent=11 // pred_check_branch
          %174 = sbr.rel (%p172) target = $region16
        $region15: #{tpu_custom_call.1} parent=11 // pred_region
          %176 = vsyncadd [#allocation6], 0
          %s177 = sshll.u32 %s2, 4
          %s178 = int_to_ptr.hbm [resolvable:$true] %s177
          %s179 = sshll.u32 [#allocation7], 4
          %s180 = int_to_ptr.vmem [resolvable:$true] %s179
          %185 = dma.hbm_to_vmem [thread:$0]  %s178, 256, %s180, [#allocation6], 64, 64, 4
        $region16: #{tpu_custom_call.1} parent=11 // pred_fallthru
          _
        // Predicated region
        $region17: #{tpu_custom_call.1} parent=11 // pred_check
          %p186 = pneg %p129
        $region18: #{tpu_custom_call.1} parent=11 // pred_check_branch
          %188 = sbr.rel (%p186) target = $region20
        $region19: #{tpu_custom_call.1} parent=11 // pred_region
          _
        $region20: #{tpu_custom_call.1} parent=11 // pred_fallthru
          _
      $region12: #{tpu_custom_call.1} parent=5 // pred_fallthru
        _
      %p189 = scmp.lt.s32.totalorder %s19, 2
      // Predicated region
      $region21: #{tpu_custom_call.1} parent=5 // pred_check
        %p190 = pneg %p189
      $region22: #{tpu_custom_call.1} parent=5 // pred_check_branch
        %192 = sbr.rel (%p190) target = $region24
      $region23: #{tpu_custom_call.1} parent=5 // pred_region
        // Predicated region
        $region25: #{tpu_custom_call.1} parent=23 // pred_check
          %p193 = pneg %p53
        $region26: #{tpu_custom_call.1} parent=23 // pred_check_branch
          %195 = sbr.rel (%p193) target = $region28
        $region27: #{tpu_custom_call.1} parent=23 // pred_region
          %s196 = sand.u32 %s43, 1
          %s197 = scalar_lea.sflag [#allocation3], %s196
          %s198 = sand.u32 %s43, 1
          %s199 = smul.addr %s198, 32
          %s200 = scalar_lea.vmem [#allocation2], %s199
          %s201 = smul.u32 2, %s27
          %203 = vsyncadd %s197, 0
          %s204 = smul.addr %s26, 8
          %s205 = sadd.s32 %s201, %s204
          %s206 = smul.addr %s205, 4
          %s207 = scalar_lea.hbm %s0, %s206
          %s208 = sshll.u32 %s207, 4
          %s209 = int_to_ptr.hbm [resolvable:$true] %s208
          %s210 = sshll.u32 %s200, 4
          %s211 = int_to_ptr.vmem [resolvable:$true] %s210
          %216 = dma.hbm_to_vmem [thread:$0]  %s209, 512, %s211, %s197, 128, 128, 8
        $region28: #{tpu_custom_call.1} parent=23 // pred_fallthru
          _
        // Predicated region
        $region29: #{tpu_custom_call.1} parent=23 // pred_check
          %p217 = pneg %p81
        $region30: #{tpu_custom_call.1} parent=23 // pred_check_branch
          %219 = sbr.rel (%p217) target = $region32
        $region31: #{tpu_custom_call.1} parent=23 // pred_region
          %s220 = sand.u32 %s19, 1
          %s221 = scalar_lea.sflag [#allocation6], %s220
          %s222 = sand.u32 %s71, 1
          %s223 = smul.addr %s222, 8
          %s224 = scalar_lea.vmem [#allocation5], %s223
          %s225 = smul.u32 2, %s27
          %227 = vsyncadd %s221, 0
          %s228 = smul.addr %s26, 2
          %s229 = sadd.s32 %s225, %s228
          %s230 = smul.addr %s229, 4
          %s231 = scalar_lea.hbm %s1, %s230
          %s233 = sshll.u32 %s231, 4
          %s234 = int_to_ptr.hbm [resolvable:$true] %s233
          %s235 = sshll.u32 %s224, 4
          %s236 = int_to_ptr.vmem [resolvable:$true] %s235
          %238 = dma.hbm_to_vmem [thread:$0]  %s234, 128, %s236, %s221
        $region32: #{tpu_custom_call.1} parent=23 // pred_fallthru
          _
      $region24: #{tpu_custom_call.1} parent=5 // pred_fallthru
        _
      %p239 = scmp.le.s32.totalorder 1, %s19
      %p240 = scmp.lt.s32.totalorder %s19, 3
      %p241 = pnand %p239, %p240
      %p242 = pneg %p241
      // Predicated region
      $region33: #{tpu_custom_call.1} parent=5 // pred_check
        _
      $region34: #{tpu_custom_call.1} parent=5 // pred_check_branch
        %244 = sbr.rel (%p241) target = $region36
      $region35: #{tpu_custom_call.1} parent=5 // pred_region
        %s245 = ssub.s32 %s19, 1
        %s246 = sand.u32 %s46, 1
        %s247 = scalar_lea.sflag [#allocation3], %s246
        %s248 = sand.u32 %s46, 1
        %s249 = smul.addr %s248, 32
        %s250 = scalar_lea.vmem [#allocation2], %s249
        // Predicated region
        $region37: #{tpu_custom_call.1} parent=35 // pred_check
          %p251 = pneg %p59
        $region38: #{tpu_custom_call.1} parent=35 // pred_check_branch
          %253 = sbr.rel (%p251) target = $region40
        $region39: #{tpu_custom_call.1} parent=35 // pred_region
          %255 = dma.done %s247, 512
        $region40: #{tpu_custom_call.1} parent=35 // pred_fallthru
          _
        %s256 = sand.u32 %s24, 1
        %s257 = scalar_lea.sflag [#allocation6], %s256
        %s258 = sand.u32 %s74, 1
        %s259 = smul.addr %s258, 8
        %s260 = scalar_lea.vmem [#allocation5], %s259
        // Predicated region
        $region41: #{tpu_custom_call.1} parent=35 // pred_check
          %p261 = pneg %p87
        $region42: #{tpu_custom_call.1} parent=35 // pred_check_branch
          %263 = sbr.rel (%p261) target = $region44
        $region43: #{tpu_custom_call.1} parent=35 // pred_region
          %265 = dma.done %s257, 128
        $region44: #{tpu_custom_call.1} parent=35 // pred_fallthru
          _
        // Predicated region
        $region45: #{tpu_custom_call.1} parent=35 // pred_check
          %p266 = pneg %p108
        $region46: #{tpu_custom_call.1} parent=35 // pred_check_branch
          %268 = sbr.rel (%p266) target = $region48
        $region47: #{tpu_custom_call.1} parent=35 // pred_region
          %270 = dma.done [#allocation6], 256
        $region48: #{tpu_custom_call.1} parent=35 // pred_fallthru
          _
        %s271 = sand.u32 %s46, 1
        %s272 = scalar_lea.sflag [#allocation3], %s271
        %s273 = sand.u32 %s46, 1
        %s274 = smul.addr %s273, 32
        %s275 = scalar_lea.vmem [#allocation2], %s274
        %p276 = pneg %p59
        %p277 = pneg %p56
        %s278 = sand.u32 %s24, 1
        %s279 = scalar_lea.sflag [#allocation6], %s278
        %s280 = sand.u32 %s74, 1
        %s281 = smul.addr %s280, 8
        %s282 = scalar_lea.vmem [#allocation5], %s281
        %p283 = pneg %p87
        %p284 = pneg %p84
        %p285 = pneg %p108
        %p286 = pneg %p105
        %p287 = pneg %p129
        %p288 = pneg %p126
        %p289 = pneg %p157
        %p290 = pneg %p154
        %s291 = sand.u32 %s144, 1
        %s292 = scalar_lea.sflag [#allocation4], %s291
        %s293 = sand.u32 %s144, 1
        %s294 = smul.addr %s293, 8
        %s295 = scalar_lea.vmem [#allocation8], %s294
        %s296 = smul.u32 2, %s29
        %s297 = smul.u32 2, %s29
        %s298 = smul.u32 2, %s29
        %v300 = vld [vmem:[#allocation7] sm:$0xf]
        %v301 = vld [vmem:[#allocation7 + $0x4] sm:$0xf]
        %v302 = vld [vmem:[#allocation7 + $0x8] sm:$0xf]
        %v303 = vld [vmem:[#allocation7 + $0xc] sm:$0xf]
        %v304 = vld [vmem:[%s250] sm:$0xff]
        %v305 = vld [vmem:[%s250 + $0x8] sm:$0xff]
        %v306 = vld [vmem:[%s250 + $0x10] sm:$0xff]
        %v307 = vld [vmem:[%s250 + $0x18] sm:$0xff]
        %v312 = vunpack.c.l.b16 %v300
        %v313 = vunpack.c.l.b16 %v301
        %v314 = vunpack.c.l.b16 %v302
        %v315 = vunpack.c.l.b16 %v303
        %v316 = vpack.c.b16 %v313, %v312
        %v317 = vpack.c.b16 %v315, %v314
        %v322 = vunpack.c.l.b16 %v304
        %v323 = vunpack.c.h.b16 %v304
        %v324 = vunpack.c.l.b16 %v305
        %v325 = vunpack.c.h.b16 %v305
        %v326 = vunpack.c.l.b16 %v306
        %v327 = vunpack.c.h.b16 %v306
        %v328 = vunpack.c.l.b16 %v307
        %v329 = vunpack.c.h.b16 %v307
        %v330 = vpack.c.b16 %v324, %v322
        %v331 = vpack.c.b16 %v325, %v323
        %v332 = vpack.c.b16 %v328, %v326
        %v333 = vpack.c.b16 %v329, %v327
        %vm338 = vcmask 261120
        %v340 = vsel %vm338, %v316, 0
        %v343 = vsel %vm338, %v317, 0
        %345 = vmatpush.bf16.msra.mxu0 0
        %346 = vmatpush.bf16.msra.mxu0 0
        %347 = vmatpush.bf16.msra.mxu0 0
        %348 = vmatpush.bf16.msra.mxu0 0
        %349 = vmatpush.bf16.msra.mxu0 0
        %350 = vmatpush.bf16.msra.mxu0 0
        %351 = vmatpush.bf16.msra.mxu0 %v332
        %352 = vmatpush.bf16.msra.mxu0 %v330
        %353 = vmatmul.bf16.gmra.mxu0 %v340
        %v354 = vpop.f32.mrf.mxu0
        %v355 = vadd.f32 0.0, %v354
        %v356 = vpop.f32.mrf.mxu0
        %v357 = vadd.f32 0.0, %v356
        %358 = vmatmul.bf16.gmra.mxu0 %v343
        %v359 = vpop.f32.mrf.mxu0
        %v360 = vadd.f32 0.0, %v359
        %v361 = vpop.f32.mrf.mxu0
        %v362 = vadd.f32 0.0, %v361
        %363 = vdwg.mxu0
        %364 = vmatpush.bf16.msra.mxu0 0
        %365 = vmatpush.bf16.msra.mxu0 0
        %366 = vmatpush.bf16.msra.mxu0 0
        %367 = vmatpush.bf16.msra.mxu0 0
        %368 = vmatpush.bf16.msra.mxu0 0
        %369 = vmatpush.bf16.msra.mxu0 0
        %370 = vmatpush.bf16.msra.mxu0 %v333
        %371 = vmatpush.bf16.msra.mxu0 %v331
        %372 = vmatmul.bf16.gmra.mxu0 %v340
        %v373 = vpop.f32.mrf.mxu0
        %v374 = vadd.f32 0.0, %v373
        %v375 = vpop.f32.mrf.mxu0
        %v376 = vadd.f32 0.0, %v375
        %377 = vmatmul.bf16.gmra.mxu0 %v343
        %v378 = vpop.f32.mrf.mxu0
        %v379 = vadd.f32 0.0, %v378
        %v380 = vpop.f32.mrf.mxu0
        %v381 = vadd.f32 0.0, %v380
        %382 = vdwg.mxu0
        %v383 = vmax.f32 %v355, 0.0
        %v384 = vmax.f32 %v374, 0.0
        %v385 = vmax.f32 %v357, 0.0
        %v386 = vmax.f32 %v376, 0.0
        %v387 = vmax.f32 %v360, 0.0
        %v388 = vmax.f32 %v379, 0.0
        %v389 = vmax.f32 %v362, 0.0
        %v390 = vmax.f32 %v381, 0.0
        %v391 = vpack.c.bf16 %v385, %v383
        %v392 = vpack.c.bf16 %v386, %v384
        %v393 = vpack.c.bf16 %v389, %v387
        %v394 = vpack.c.bf16 %v390, %v388
        %v395 = vld [vmem:[%s3] sm:$0x3]
        %v397 = vsel %vm338, %v395, 0
        %399 = vmatpush.bf16.msra.mxu0 0
        %400 = vmatpush.bf16.msra.mxu0 0
        %401 = vmatpush.bf16.msra.mxu0 0
        %402 = vmatpush.bf16.msra.mxu0 0
        %403 = vmatpush.bf16.msra.mxu0 0
        %404 = vmatpush.bf16.msra.mxu0 0
        %405 = vmatpush.bf16.msra.mxu0 %v393
        %406 = vmatpush.bf16.msra.mxu0 %v391
        %407 = vmatmul.bf16.gmra.mxu0 %v397
        %v408 = vpop.f32.mrf.mxu0
        %v409 = vadd.f32 0.0, %v408
        %v410 = vpop.f32.mrf.mxu0
        %411 = vdwg.mxu0
        %412 = vmatpush.bf16.msra.mxu0 0
        %413 = vmatpush.bf16.msra.mxu0 0
        %414 = vmatpush.bf16.msra.mxu0 0
        %415 = vmatpush.bf16.msra.mxu0 0
        %416 = vmatpush.bf16.msra.mxu0 0
        %417 = vmatpush.bf16.msra.mxu0 0
        %418 = vmatpush.bf16.msra.mxu0 %v394
        %419 = vmatpush.bf16.msra.mxu0 %v392
        %420 = vmatmul.bf16.gmra.mxu0 %v397
        %v421 = vpop.f32.mrf.mxu0
        %v422 = vadd.f32 0.0, %v421
        %v423 = vpop.f32.mrf.mxu0
        %424 = vdwg.mxu0
        %v425 = vmax.f32 %v409, 0.0
        %v426 = vmax.f32 %v422, 0.0
        %v427 = vsub.f32 0.0, %v425
        %v428 = vsub.f32 0.0, %v426
        %v429 = vmul.f32 %v427, 1.442695
        %v430 = vpow.pop %v429
        %v431 = vmul.f32 %v428, 1.442695
        %v432 = vpow.pop %v431
        %v433 = vadd.f32 %v430, 1.0
        %v434 = vadd.f32 %v432, 1.0
        %v435 = vrcp.pop %v433
        %v436 = vrcp.pop %v434
        %v437 = vld [vmem:[%s260] sm:$0xff]
        %v440 = vrot.slane %v436, 4
        %vm441 = vcmask 1043456
        %v442 = vsel %vm441, %v435, %v440
        %v444 = vmul.f32 %v437, %v442
        %445 = vst [vmem:[%s295] sm:$0xff] %v444
        %s446 = sand.u32 %s144, 1
        %s447 = scalar_lea.sflag [#allocation4], %s446
        %s448 = sand.u32 %s144, 1
        %s449 = smul.addr %s448, 8
        %s450 = scalar_lea.vmem [#allocation8], %s449
        // Predicated region
        $region49: #{tpu_custom_call.1} parent=35 // pred_check
          %p451 = pneg %p154
        $region50: #{tpu_custom_call.1} parent=35 // pred_check_branch
          %453 = sbr.rel (%p451) target = $region52
        $region51: #{tpu_custom_call.1} parent=35 // pred_region
          %s454 = smul.u32 2, %s29
          %456 = vsyncadd %s447, 0
          %s457 = smul.addr %s28, 2
          %s458 = sadd.s32 %s454, %s457
          %s459 = smul.addr %s458, 4
          %s460 = scalar_lea.hbm %s4, %s459
          %s462 = sshll.u32 %s450, 4
          %s463 = int_to_ptr.vmem [resolvable:$true] %s462
          %s464 = sshll.u32 %s460, 4
          %s465 = int_to_ptr.hbm [resolvable:$true] %s464
          %467 = dma.vmem_to_hbm [thread:$0]  %s463, 128, %s465, %s447
        $region52: #{tpu_custom_call.1} parent=35 // pred_fallthru
          _
      $region36: #{tpu_custom_call.1} parent=5 // pred_fallthru
        _
      %p468 = scmp.le.s32.totalorder 2, %s19
      // Predicated region
      $region53: #{tpu_custom_call.1} parent=5 // pred_check
        %p469 = pneg %p468
      $region54: #{tpu_custom_call.1} parent=5 // pred_check_branch
        %471 = sbr.rel (%p469) target = $region56
      $region55: #{tpu_custom_call.1} parent=5 // pred_region
        %s472 = ssub.s32 %s19, 2
        // Predicated region
        $region57: #{tpu_custom_call.1} parent=55 // pred_check
          %p473 = pneg %p160
        $region58: #{tpu_custom_call.1} parent=55 // pred_check_branch
          %475 = sbr.rel (%p473) target = $region60
        $region59: #{tpu_custom_call.1} parent=55 // pred_region
          %s476 = sand.u32 %s145, 1
          %s477 = scalar_lea.sflag [#allocation4], %s476
          %s478 = sand.u32 %s145, 1
          %s479 = smul.addr %s478, 8
          %s480 = scalar_lea.vmem [#allocation8], %s479
          %482 = dma.done %s477, 128
        $region60: #{tpu_custom_call.1} parent=55 // pred_fallthru
          _
      $region56: #{tpu_custom_call.1} parent=5 // pred_fallthru
        _
    $region6: #{tpu_custom_call.1} parent=1 // loop_footer
      %s23 = sadd.s32 1, %s19
    $region7: #{tpu_custom_call.1} parent=1 // loop_footer_branch
      %18 = sbr.rel target = $region3
    $region8: #{tpu_custom_call.1} parent=1 // loop_exit
      _
    %483 = vsyncpa [#allocation3], 1
    %s484 = scalar_lea.sflag [#allocation3], 1
    %485 = vsyncpa %s484, 1
    %486 = vsyncpa [#allocation6], 1
    %s487 = scalar_lea.sflag [#allocation6], 1
    %488 = vsyncpa %s487, 1
    %489 = vsyncpa [#allocation4], 1
    %s490 = scalar_lea.sflag [#allocation4], 1
    %491 = vsyncpa %s490, 1

</llo_original>
